<compile_context>
chip_gen: v7x
topology: tpu7x:2x2x1
jax: 0.10.0
libtpu: 0.0.40
codegen_flags: <defaults>
</compile_context>

<pallas_src>
import functools

import jax
import jax.numpy as jnp
from jax.experimental import pallas as pl
from jax.experimental.pallas import tpu as pltpu

# Layer sizes from the PyTorch module's __init__.
LAYER_DIMS = [75, 256, 128, 64, 32, 5]
OUT_DIM = LAYER_DIMS[-1]
OUT_PAD = 8            # pad final layer 5 -> 8 cols (full-array last dim; 16x less HBM writeback than 128)
DEFAULT_TM = 2048      # batch tile: multiple of 256; amortizes per-grid-step overhead, fits scoped VMEM


def _round_up(x: int, m: int) -> int:
    return ((x + m - 1) // m) * m


def mlp_kernel(x_ref,
               w1_ref, b1_ref,
               w2_ref, b2_ref,
               w3_ref, b3_ref,
               w4_ref, b4_ref,
               w5_ref, b5_ref,
               o_ref):
    """One batch tile of the fused MLP: 5 matmuls + bias + ReLU, all in VMEM.

    Weights are bf16 (MXU inputs); accumulation / bias / ReLU are f32.
    Final layer is padded to 8 output columns; the store is a narrow (TM, 8) slab.
    """
    h = x_ref[...]  # (TM, 75) f32

    # Layer 1: 75 -> 256, ReLU   (Dropout(0.25) is identity at inference)
    h = jnp.dot(h.astype(jnp.bfloat16), w1_ref[...],
                preferred_element_type=jnp.float32) + b1_ref[...]
    h = jnp.maximum(h, 0.0)

    # Layer 2: 256 -> 128, ReLU
    h = jnp.dot(h.astype(jnp.bfloat16), w2_ref[...],
                preferred_element_type=jnp.float32) + b2_ref[...]
    h = jnp.maximum(h, 0.0)

    # Layer 3: 128 -> 64, ReLU
    h = jnp.dot(h.astype(jnp.bfloat16), w3_ref[...],
                preferred_element_type=jnp.float32) + b3_ref[...]
    h = jnp.maximum(h, 0.0)

    # Layer 4: 64 -> 32, ReLU
    h = jnp.dot(h.astype(jnp.bfloat16), w4_ref[...],
                preferred_element_type=jnp.float32) + b4_ref[...]
    h = jnp.maximum(h, 0.0)

    # Layer 5: 32 -> 8 (padded from 5; no activation).
    out = jnp.dot(h.astype(jnp.bfloat16), w5_ref[...],
                  preferred_element_type=jnp.float32) + b5_ref[...]
    o_ref[...] = out.astype(o_ref.dtype)


def init_params(key):
    """Deterministic init matching PyTorch nn.Linear default:
    W, b ~ U(-1/sqrt(fan_in), 1/sqrt(fan_in)).
    Weights stored as (in, out) bf16; biases stored as (1, out) f32."""
    params = []
    for i in range(len(LAYER_DIMS) - 1):
        fan_in, fan_out = LAYER_DIMS[i], LAYER_DIMS[i + 1]
        key, kw, kb = jax.random.split(key, 3)
        bound = 1.0 / jnp.sqrt(float(fan_in))
        w = jax.random.uniform(kw, (fan_in, fan_out), jnp.float32, -bound, bound)
        b = jax.random.uniform(kb, (1, fan_out), jnp.float32, -bound, bound)
        params.append((w.astype(jnp.bfloat16), b))
    return params


@functools.partial(jax.jit, static_argnames=("tm",))
def mymlp_forward(x, params, tm=DEFAULT_TM):
    batch = x.shape[0]

    # Tile choice:
    #  * batch < 256: one block spanning the whole batch (block dim == array dim -> always
    #    legal, no pre-pad of x, no boundary block).
    #  * batch >= 256: multiple of 256, capped at ceil(batch/2) so num_tiles >= 2 (both
    #    v7x TensorCores active). Grid = cdiv(batch, tm); the boundary block is masked by
    #    Pallas, so x is never padded/copied in HBM.
    if batch < 256:
        tm_eff = batch
    else:
        tm_eff = min(tm, max(256, _round_up(-(-batch // 2), 256)))
    num_tiles = pl.cdiv(batch, tm_eff)

    # Pad the final layer from 5 to 8 output columns (zeros) -> small output slab.
    (w1, b1), (w2, b2), (w3, b3), (w4, b4), (w5, b5) = params
    w5p = jnp.pad(w5, ((0, 0), (0, OUT_PAD - OUT_DIM)))
    b5p = jnp.pad(b5, ((0, 0), (0, OUT_PAD - OUT_DIM)))
    flat = [w1, b1, w2, b2, w3, b3, w4, b4, w5p, b5p]

    # Weights/biases: constant index_map -> DMA'd once, resident in VMEM across grid steps.
    const_map = lambda i: (0, 0)
    weight_specs = [pl.BlockSpec(arr.shape, const_map) for arr in flat]

    flops = 2 * batch * sum(LAYER_DIMS[i] * LAYER_DIMS[i + 1]
                            for i in range(len(LAYER_DIMS) - 1))
    bytes_accessed = (batch * (LAYER_DIMS[0] * 4 + OUT_PAD * 4)
                      + sum(int(a.size) * a.dtype.itemsize for a in flat))

    out_padded = pl.pallas_call(
        mlp_kernel,
        out_shape=jax.ShapeDtypeStruct((batch, OUT_PAD), jnp.float32),
        grid_spec=pltpu.PrefetchScalarGridSpec(
            num_scalar_prefetch=0,
            grid=(num_tiles,),
            in_specs=[pl.BlockSpec((tm_eff, LAYER_DIMS[0]), lambda i: (i, 0))]
                     + weight_specs,
            out_specs=pl.BlockSpec((tm_eff, OUT_PAD), lambda i: (i, 0)),
        ),
        compiler_params=pltpu.CompilerParams(
            dimension_semantics=("parallel",),
        ),
        cost_estimate=pl.CostEstimate(
            flops=flops, transcendentals=0, bytes_accessed=bytes_accessed),
    )(x, *flat)

    # Tiny slice over a (batch, 8) array (was a full pass over a (batch, 128) f32 slab).
    return out_padded[:, :OUT_DIM]


def reference_forward(x, params):
    """Pure-JAX reference mirroring the kernel math (bf16 matmul inputs, f32 accumulate)."""
    h = x
    for i, (w, b) in enumerate(params):
        h = jnp.dot(h.astype(jnp.bfloat16), w,
                    preferred_element_type=jnp.float32) + b
        if i < len(params) - 1:
            h = jnp.maximum(h, 0.0)
    return h


def reference_forward_f32(x, params):
    """Full-f32 reference (PyTorch-like semantics, modulo bf16 weight storage)."""
    h = x
    for i, (w, b) in enumerate(params):
        h = jnp.dot(h, w.astype(jnp.float32),
                    preferred_element_type=jnp.float32) + b
        if i < len(params) - 1:
            h = jnp.maximum(h, 0.0)
    return h


if __name__ == "__main__":
    key = jax.random.PRNGKey(0)
    kp, kx = jax.random.split(key)

    params = init_params(kp)

    batch = 8
    x = jax.random.normal(kx, (batch, LAYER_DIMS[0]), jnp.float32)

    out = mymlp_forward(x, params)
    out = jax.block_until_ready(out)

    assert out.shape == (batch, OUT_DIM), out.shape

    # Exact-math mirror of the kernel (bf16 matmul inputs, f32 accumulate): tight tolerance.
    ref_bf16 = reference_forward(x, params)
    assert jnp.allclose(out, ref_bf16, atol=1e-2, rtol=1e-2), "mismatch vs bf16 reference"

    # Sanity check against full-f32 math to confirm bf16 activation casts stay in tolerance.
    ref_f32 = reference_forward_f32(x, params)
    assert jnp.allclose(out, ref_f32, atol=1e-1, rtol=1e-1), "mismatch vs f32 reference"

    print("KERNEL_OK")
</pallas_src>

<mosaic_0001>
module attributes {stable_mosaic.version = 11 : i64} {
  func.func @mlp_kernel(%arg0: i32, %arg1: memref<8x75xf32, #tpu.memory_space<vmem>>, %arg2: memref<75x256xbf16, #tpu.memory_space<vmem>>, %arg3: memref<1x256xf32, #tpu.memory_space<vmem>>, %arg4: memref<256x128xbf16, #tpu.memory_space<vmem>>, %arg5: memref<1x128xf32, #tpu.memory_space<vmem>>, %arg6: memref<128x64xbf16, #tpu.memory_space<vmem>>, %arg7: memref<1x64xf32, #tpu.memory_space<vmem>>, %arg8: memref<64x32xbf16, #tpu.memory_space<vmem>>, %arg9: memref<1x32xf32, #tpu.memory_space<vmem>>, %arg10: memref<32x8xbf16, #tpu.memory_space<vmem>>, %arg11: memref<1x8xf32, #tpu.memory_space<vmem>>, %arg12: memref<8x8xf32, #tpu.memory_space<vmem>>) attributes {dimension_semantics = [#tpu.dimension_semantics<parallel>], iteration_bounds = array<i64: 1>, scalar_prefetch = 0 : i64, scratch_operands = 0 : i64, tpu.core_type = #tpu.core_type<tc>, window_params = [{transform_indices = @transform_0, window_bounds = array<i64: 8, 75>}, {pipeline_mode = #tpu.pipeline_mode<synchronous>, transform_indices = @transform_1, window_bounds = array<i64: 75, 256>}, {pipeline_mode = #tpu.pipeline_mode<synchronous>, transform_indices = @transform_2, window_bounds = array<i64: 1, 256>}, {pipeline_mode = #tpu.pipeline_mode<synchronous>, transform_indices = @transform_3, window_bounds = array<i64: 256, 128>}, {pipeline_mode = #tpu.pipeline_mode<synchronous>, transform_indices = @transform_4, window_bounds = array<i64: 1, 128>}, {pipeline_mode = #tpu.pipeline_mode<synchronous>, transform_indices = @transform_5, window_bounds = array<i64: 128, 64>}, {pipeline_mode = #tpu.pipeline_mode<synchronous>, transform_indices = @transform_6, window_bounds = array<i64: 1, 64>}, {pipeline_mode = #tpu.pipeline_mode<synchronous>, transform_indices = @transform_7, window_bounds = array<i64: 64, 32>}, {pipeline_mode = #tpu.pipeline_mode<synchronous>, transform_indices = @transform_8, window_bounds = array<i64: 1, 32>}, {pipeline_mode = #tpu.pipeline_mode<synchronous>, transform_indices = @transform_9, window_bounds = array<i64: 32, 8>}, {pipeline_mode = #tpu.pipeline_mode<synchronous>, transform_indices = @transform_10, window_bounds = array<i64: 1, 8>}, {transform_indices = @transform_11, window_bounds = array<i64: 8, 8>}]} {
    %c0 = arith.constant 0 : index
    %c0_0 = arith.constant 0 : index
    %0 = vector.load %arg1[%c0, %c0_0] : memref<8x75xf32, #tpu.memory_space<vmem>>, vector<8x75xf32>
    %1 = arith.truncf %0 : vector<8x75xf32> to vector<8x75xbf16>
    %c0_1 = arith.constant 0 : index
    %c0_2 = arith.constant 0 : index
    %2 = vector.load %arg2[%c0_1, %c0_2] : memref<75x256xbf16, #tpu.memory_space<vmem>>, vector<75x256xbf16>
    %cst = arith.constant dense<0.000000e+00> : vector<8x256xf32>
    %3 = tpu.matmul %1, %2, %cst {dimension_numbers = #tpu.dot_dimension_numbers<[1], [0], [0], [1], [0, 0, 1, 1], [], []>} : vector<8x75xbf16>, vector<75x256xbf16>, vector<8x256xf32> -> vector<8x256xf32>
    %c0_3 = arith.constant 0 : index
    %c0_4 = arith.constant 0 : index
    %4 = vector.load %arg3[%c0_3, %c0_4] : memref<1x256xf32, #tpu.memory_space<vmem>>, vector<1x256xf32>
    %5 = vector.broadcast %4 : vector<1x256xf32> to vector<8x256xf32>
    %6 = arith.addf %3, %5 : vector<8x256xf32>
    %cst_5 = arith.constant 0.000000e+00 : f32
    %7 = vector.broadcast %cst_5 : f32 to vector<8x256xf32>
    %8 = arith.maximumf %6, %7 : vector<8x256xf32>
    %9 = arith.truncf %8 : vector<8x256xf32> to vector<8x256xbf16>
    %c0_6 = arith.constant 0 : index
    %c0_7 = arith.constant 0 : index
    %10 = vector.load %arg4[%c0_6, %c0_7] : memref<256x128xbf16, #tpu.memory_space<vmem>>, vector<256x128xbf16>
    %cst_8 = arith.constant dense<0.000000e+00> : vector<8x128xf32>
    %11 = tpu.matmul %9, %10, %cst_8 {dimension_numbers = #tpu.dot_dimension_numbers<[1], [0], [0], [1], [0, 0, 1, 1], [], []>} : vector<8x256xbf16>, vector<256x128xbf16>, vector<8x128xf32> -> vector<8x128xf32>
    %c0_9 = arith.constant 0 : index
    %c0_10 = arith.constant 0 : index
    %12 = vector.load %arg5[%c0_9, %c0_10] : memref<1x128xf32, #tpu.memory_space<vmem>>, vector<1x128xf32>
    %13 = vector.broadcast %12 : vector<1x128xf32> to vector<8x128xf32>
    %14 = arith.addf %11, %13 : vector<8x128xf32>
    %cst_11 = arith.constant 0.000000e+00 : f32
    %15 = vector.broadcast %cst_11 : f32 to vector<8x128xf32>
    %16 = arith.maximumf %14, %15 : vector<8x128xf32>
    %17 = arith.truncf %16 : vector<8x128xf32> to vector<8x128xbf16>
    %c0_12 = arith.constant 0 : index
    %c0_13 = arith.constant 0 : index
    %18 = vector.load %arg6[%c0_12, %c0_13] : memref<128x64xbf16, #tpu.memory_space<vmem>>, vector<128x64xbf16>
    %cst_14 = arith.constant dense<0.000000e+00> : vector<8x64xf32>
    %19 = tpu.matmul %17, %18, %cst_14 {dimension_numbers = #tpu.dot_dimension_numbers<[1], [0], [0], [1], [0, 0, 1, 1], [], []>} : vector<8x128xbf16>, vector<128x64xbf16>, vector<8x64xf32> -> vector<8x64xf32>
    %c0_15 = arith.constant 0 : index
    %c0_16 = arith.constant 0 : index
    %20 = vector.load %arg7[%c0_15, %c0_16] : memref<1x64xf32, #tpu.memory_space<vmem>>, vector<1x64xf32>
    %21 = vector.broadcast %20 : vector<1x64xf32> to vector<8x64xf32>
    %22 = arith.addf %19, %21 : vector<8x64xf32>
    %cst_17 = arith.constant 0.000000e+00 : f32
    %23 = vector.broadcast %cst_17 : f32 to vector<8x64xf32>
    %24 = arith.maximumf %22, %23 : vector<8x64xf32>
    %25 = arith.truncf %24 : vector<8x64xf32> to vector<8x64xbf16>
    %c0_18 = arith.constant 0 : index
    %c0_19 = arith.constant 0 : index
    %26 = vector.load %arg8[%c0_18, %c0_19] : memref<64x32xbf16, #tpu.memory_space<vmem>>, vector<64x32xbf16>
    %cst_20 = arith.constant dense<0.000000e+00> : vector<8x32xf32>
    %27 = tpu.matmul %25, %26, %cst_20 {dimension_numbers = #tpu.dot_dimension_numbers<[1], [0], [0], [1], [0, 0, 1, 1], [], []>} : vector<8x64xbf16>, vector<64x32xbf16>, vector<8x32xf32> -> vector<8x32xf32>
    %c0_21 = arith.constant 0 : index
    %c0_22 = arith.constant 0 : index
    %28 = vector.load %arg9[%c0_21, %c0_22] : memref<1x32xf32, #tpu.memory_space<vmem>>, vector<1x32xf32>
    %29 = vector.broadcast %28 : vector<1x32xf32> to vector<8x32xf32>
    %30 = arith.addf %27, %29 : vector<8x32xf32>
    %cst_23 = arith.constant 0.000000e+00 : f32
    %31 = vector.broadcast %cst_23 : f32 to vector<8x32xf32>
    %32 = arith.maximumf %30, %31 : vector<8x32xf32>
    %33 = arith.truncf %32 : vector<8x32xf32> to vector<8x32xbf16>
    %c0_24 = arith.constant 0 : index
    %c0_25 = arith.constant 0 : index
    %34 = vector.load %arg10[%c0_24, %c0_25] : memref<32x8xbf16, #tpu.memory_space<vmem>>, vector<32x8xbf16>
    %cst_26 = arith.constant dense<0.000000e+00> : vector<8x8xf32>
    %35 = tpu.matmul %33, %34, %cst_26 {dimension_numbers = #tpu.dot_dimension_numbers<[1], [0], [0], [1], [0, 0, 1, 1], [], []>} : vector<8x32xbf16>, vector<32x8xbf16>, vector<8x8xf32> -> vector<8x8xf32>
    %c0_27 = arith.constant 0 : index
    %c0_28 = arith.constant 0 : index
    %36 = vector.load %arg11[%c0_27, %c0_28] : memref<1x8xf32, #tpu.memory_space<vmem>>, vector<1x8xf32>
    %37 = vector.broadcast %36 : vector<1x8xf32> to vector<8x8xf32>
    %38 = arith.addf %35, %37 : vector<8x8xf32>
    %c0_29 = arith.constant 0 : index
    %c0_30 = arith.constant 0 : index
    %39 = vector.load %arg12[%c0_29, %c0_30] : memref<8x8xf32, #tpu.memory_space<vmem>>, vector<8x8xf32>
    tpu.vector_store %arg12[%c0_29, %c0_30], %38 {strides = array<i32>} : memref<8x8xf32, #tpu.memory_space<vmem>>, vector<8x8xf32>,
    return
  }
  func.func @transform_0(%arg0: i32) -> (i32, i32) {
    %c0_i32 = arith.constant 0 : i32
    %c0_i32_0 = arith.constant 0 : i32
    return %arg0, %c0_i32 : i32, i32
  }
  func.func @transform_1(%arg0: i32) -> (i32, i32) {
    %c0_i32 = arith.constant 0 : i32
    %c0_i32_0 = arith.constant 0 : i32
    %c0_i32_1 = arith.constant 0 : i32
    return %c0_i32, %c0_i32_0 : i32, i32
  }
  func.func @transform_2(%arg0: i32) -> (i32, i32) {
    %c0_i32 = arith.constant 0 : i32
    %c0_i32_0 = arith.constant 0 : i32
    %c0_i32_1 = arith.constant 0 : i32
    return %c0_i32, %c0_i32_0 : i32, i32
  }
  func.func @transform_3(%arg0: i32) -> (i32, i32) {
    %c0_i32 = arith.constant 0 : i32
    %c0_i32_0 = arith.constant 0 : i32
    %c0_i32_1 = arith.constant 0 : i32
    return %c0_i32, %c0_i32_0 : i32, i32
  }
  func.func @transform_4(%arg0: i32) -> (i32, i32) {
    %c0_i32 = arith.constant 0 : i32
    %c0_i32_0 = arith.constant 0 : i32
    %c0_i32_1 = arith.constant 0 : i32
    return %c0_i32, %c0_i32_0 : i32, i32
  }
  func.func @transform_5(%arg0: i32) -> (i32, i32) {
    %c0_i32 = arith.constant 0 : i32
    %c0_i32_0 = arith.constant 0 : i32
    %c0_i32_1 = arith.constant 0 : i32
    return %c0_i32, %c0_i32_0 : i32, i32
  }
  func.func @transform_6(%arg0: i32) -> (i32, i32) {
    %c0_i32 = arith.constant 0 : i32
    %c0_i32_0 = arith.constant 0 : i32
    %c0_i32_1 = arith.constant 0 : i32
    return %c0_i32, %c0_i32_0 : i32, i32
  }
  func.func @transform_7(%arg0: i32) -> (i32, i32) {
    %c0_i32 = arith.constant 0 : i32
    %c0_i32_0 = arith.constant 0 : i32
    %c0_i32_1 = arith.constant 0 : i32
    return %c0_i32, %c0_i32_0 : i32, i32
  }
  func.func @transform_8(%arg0: i32) -> (i32, i32) {
    %c0_i32 = arith.constant 0 : i32
    %c0_i32_0 = arith.constant 0 : i32
    %c0_i32_1 = arith.constant 0 : i32
    return %c0_i32, %c0_i32_0 : i32, i32
  }
  func.func @transform_9(%arg0: i32) -> (i32, i32) {
    %c0_i32 = arith.constant 0 : i32
    %c0_i32_0 = arith.constant 0 : i32
    %c0_i32_1 = arith.constant 0 : i32
    return %c0_i32, %c0_i32_0 : i32, i32
  }
  func.func @transform_10(%arg0: i32) -> (i32, i32) {
    %c0_i32 = arith.constant 0 : i32
    %c0_i32_0 = arith.constant 0 : i32
    %c0_i32_1 = arith.constant 0 : i32
    return %c0_i32, %c0_i32_0 : i32, i32
  }
  func.func @transform_11(%arg0: i32) -> (i32, i32) {
    %c0_i32 = arith.constant 0 : i32
    %c0_i32_0 = arith.constant 0 : i32
    return %arg0, %c0_i32 : i32, i32
  }
}

</mosaic_0001>

<llo_original>
// kernel: mymlp_forward.1
$region0: #{mymlp_forward.1}
  #allocation0 [shape = 'u32[]', space=smem, size = 0x4, offset = 0x4, fixed_abs, tag = 'smem constant byte address 0x4 - core index']
  #allocation1 [shape = 'u32[144,128]{1,0:T(1,128)}', space=vmem, size = 0x12000, scoped, tag = 'internal scratch']
  %s0 = inlined_call_operand.hbm [shape: f32[8,75], index: 0, kind: input, shape index: {}]
  %s1 = inlined_call_operand.vmem [shape: bf16[75,256], index: 1, kind: input, shape index: {}]
  %s2 = inlined_call_operand.vmem [shape: f32[1,256], index: 2, kind: input, shape index: {}]
  %s3 = inlined_call_operand.vmem [shape: bf16[256,128], index: 3, kind: input, shape index: {}]
  %s4 = inlined_call_operand.vmem [shape: f32[1,128], index: 4, kind: input, shape index: {}]
  %s5 = inlined_call_operand.vmem [shape: bf16[128,64], index: 5, kind: input, shape index: {}]
  %s6 = inlined_call_operand.hbm [shape: f32[1,64], index: 6, kind: input, shape index: {}]
  %s7 = inlined_call_operand.vmem [shape: bf16[64,32], index: 7, kind: input, shape index: {}]
  %s8 = inlined_call_operand.hbm [shape: f32[1,32], index: 8, kind: input, shape index: {}]
  %s9 = inlined_call_operand.vmem [shape: bf16[32,8], index: 9, kind: input, shape index: {}]
  %s10 = inlined_call_operand.vmem [shape: f32[1,8], index: 10, kind: input, shape index: {}]
  %s11 = inlined_call_operand.hbm [shape: f32[8,8], index: 11, kind: output, shape index: {}]
  %s12 = sld [smem:[#allocation0]]
  $region66: #{mymlp_forward.1} parent=0
    _
  %s14 = ssub.s32 1, %s12
  %s15 = scalar_select 0, %s14, %s12
  $region1: #{mymlp_forward.1} parent=0
    #allocation2 [shape = 'u8[4096]{0}', space=vmem, size = 0x1000, scoped, tag = 'input window, operand 0, single buffered']
    #allocation3 [shape = 's32[1]{0}', space=sflag, size = 0x4, scoped, tag = 'scoped memory for mymlp_forward.1']
    #allocation4 [shape = 's32[1]{0}', space=sflag, size = 0x4, scoped, tag = 'scoped memory for mymlp_forward.1']
    #allocation5 [shape = 'u8[512]{0}', space=vmem, size = 0x400, scoped, tag = 'input window, operand 6, single buffered']
    #allocation6 [shape = 's32[1]{0}', space=sflag, size = 0x4, scoped, tag = 'scoped memory for mymlp_forward.1']
    #allocation7 [shape = 'u8[512]{0}', space=vmem, size = 0x400, scoped, tag = 'input window, operand 8, single buffered']
    #allocation8 [shape = 'u8[4096]{0}', space=vmem, size = 0x1000, scoped, tag = 'output window, operand 0, single buffered']
    %16 = vsyncpa [#allocation3], 0
    %17 = vsyncpa [#allocation6], 0
    %18 = vsyncpa [#allocation4], 0
    // Predicated region
    $region2: #{mymlp_forward.1} parent=1 // pred_check
      _
    $region3: #{mymlp_forward.1} parent=1 // pred_check_branch
      %20 = sbr.rel (0) target = $region5
    $region4: #{mymlp_forward.1} parent=1 // pred_region
      %s22 = ssub.s32 128, 128
      %23 = vsyncadd [#allocation3], %s22
      %s25 = sshll.u32 [#allocation2], 4
      %s26 = int_to_ptr.vmem [resolvable:$true] %s25
      %28 = dma.hbm_to_vmem [thread:$0]  %s0, 128, %s26, [#allocation3]
    $region5: #{mymlp_forward.1} parent=1 // pred_fallthru
      _
    // Predicated region
    $region6: #{mymlp_forward.1} parent=1 // pred_check
      _
    $region7: #{mymlp_forward.1} parent=1 // pred_check_branch
      %30 = sbr.rel (0) target = $region9
    $region8: #{mymlp_forward.1} parent=1 // pred_region
      _
    $region9: #{mymlp_forward.1} parent=1 // pred_fallthru
      _
    // Predicated region
    $region10: #{mymlp_forward.1} parent=1 // pred_check
      _
    $region11: #{mymlp_forward.1} parent=1 // pred_check_branch
      %32 = sbr.rel (0) target = $region13
    $region12: #{mymlp_forward.1} parent=1 // pred_region
      _
    $region13: #{mymlp_forward.1} parent=1 // pred_fallthru
      _
    // Predicated region
    $region14: #{mymlp_forward.1} parent=1 // pred_check
      _
    $region15: #{mymlp_forward.1} parent=1 // pred_check_branch
      %34 = sbr.rel (0) target = $region17
    $region16: #{mymlp_forward.1} parent=1 // pred_region
      _
    $region17: #{mymlp_forward.1} parent=1 // pred_fallthru
      _
    // Predicated region
    $region18: #{mymlp_forward.1} parent=1 // pred_check
      _
    $region19: #{mymlp_forward.1} parent=1 // pred_check_branch
      %36 = sbr.rel (0) target = $region21
    $region20: #{mymlp_forward.1} parent=1 // pred_region
      _
    $region21: #{mymlp_forward.1} parent=1 // pred_fallthru
      _
    // Predicated region
    $region22: #{mymlp_forward.1} parent=1 // pred_check
      _
    $region23: #{mymlp_forward.1} parent=1 // pred_check_branch
      %38 = sbr.rel (0) target = $region25
    $region24: #{mymlp_forward.1} parent=1 // pred_region
      _
    $region25: #{mymlp_forward.1} parent=1 // pred_fallthru
      _
    // Predicated region
    $region26: #{mymlp_forward.1} parent=1 // pred_check
      _
    $region27: #{mymlp_forward.1} parent=1 // pred_check_branch
      %40 = sbr.rel (0) target = $region29
    $region28: #{mymlp_forward.1} parent=1 // pred_region
      %s42 = ssub.s32 16, 16
      %43 = vsyncadd [#allocation6], %s42
      %s45 = sshll.u32 [#allocation5], 4
      %s46 = int_to_ptr.vmem [resolvable:$true] %s45
      %48 = dma.hbm_to_vmem [thread:$0]  %s6, 16, %s46, [#allocation6]
    $region29: #{mymlp_forward.1} parent=1 // pred_fallthru
      _
    // Predicated region
    $region30: #{mymlp_forward.1} parent=1 // pred_check
      _
    $region31: #{mymlp_forward.1} parent=1 // pred_check_branch
      %50 = sbr.rel (0) target = $region33
    $region32: #{mymlp_forward.1} parent=1 // pred_region
      _
    $region33: #{mymlp_forward.1} parent=1 // pred_fallthru
      _
    // Predicated region
    $region34: #{mymlp_forward.1} parent=1 // pred_check
      _
    $region35: #{mymlp_forward.1} parent=1 // pred_check_branch
      %52 = sbr.rel (0) target = $region37
    $region36: #{mymlp_forward.1} parent=1 // pred_region
      %s54 = ssub.s32 16, 16
      %55 = vsyncadd [#allocation6], %s54
      %s57 = sshll.u32 [#allocation7], 4
      %s58 = int_to_ptr.vmem [resolvable:$true] %s57
      %60 = dma.hbm_to_vmem [thread:$0]  %s8, 16, %s58, [#allocation6]
    $region37: #{mymlp_forward.1} parent=1 // pred_fallthru
      _
    // Predicated region
    $region38: #{mymlp_forward.1} parent=1 // pred_check
      _
    $region39: #{mymlp_forward.1} parent=1 // pred_check_branch
      %62 = sbr.rel (0) target = $region41
    $region40: #{mymlp_forward.1} parent=1 // pred_region
      _
    $region41: #{mymlp_forward.1} parent=1 // pred_fallthru
      _
    // Predicated region
    $region42: #{mymlp_forward.1} parent=1 // pred_check
      _
    $region43: #{mymlp_forward.1} parent=1 // pred_check_branch
      %64 = sbr.rel (0) target = $region45
    $region44: #{mymlp_forward.1} parent=1 // pred_region
      _
    $region45: #{mymlp_forward.1} parent=1 // pred_fallthru
      _
    // Predicated region
    $region46: #{mymlp_forward.1} parent=1 // pred_check
      _
    $region47: #{mymlp_forward.1} parent=1 // pred_check_branch
      %66 = sbr.rel (0) target = $region49
    $region48: #{mymlp_forward.1} parent=1 // pred_region
      %67 = dma.done [#allocation3], 128
    $region49: #{mymlp_forward.1} parent=1 // pred_fallthru
      _
    // Predicated region
    $region50: #{mymlp_forward.1} parent=1 // pred_check
      _
    $region51: #{mymlp_forward.1} parent=1 // pred_check_branch
      %69 = sbr.rel (0) target = $region53
    $region52: #{mymlp_forward.1} parent=1 // pred_region
      %70 = dma.done [#allocation6], 16
    $region53: #{mymlp_forward.1} parent=1 // pred_fallthru
      _
    // Predicated region
    $region54: #{mymlp_forward.1} parent=1 // pred_check
      _
    $region55: #{mymlp_forward.1} parent=1 // pred_check_branch
      %72 = sbr.rel (0) target = $region57
    $region56: #{mymlp_forward.1} parent=1 // pred_region
      %73 = dma.done [#allocation6], 16
    $region57: #{mymlp_forward.1} parent=1 // pred_fallthru
      _
    %v75 = vld [vmem:[#allocation2] sm:$0xff]
    %v76 = vpack.c.bf16 %v75, %v75
    %v77 = vld [vmem:[%s1] sm:$0xff]
    %v78 = vld [vmem:[%s1 + $0x8] sm:$0xff]
    %v79 = vld [vmem:[%s1 + $0x10] sm:$0xff]
    %v80 = vld [vmem:[%s1 + $0x18] sm:$0xff]
    %v81 = vld [vmem:[%s1 + $0x20] sm:$0xff]
    %v82 = vld [vmem:[%s1 + $0x28] sm:$0xff]
    %v83 = vld [vmem:[%s1 + $0x30] sm:$0xff]
    %v84 = vld [vmem:[%s1 + $0x38] sm:$0xff]
    %v85 = vld [vmem:[%s1 + $0x40] sm:$0xff]
    %v86 = vld [vmem:[%s1 + $0x48] sm:$0x33]
    %v87 = vld [vmem:[%s2] sm:$0x3]
    %v89 = vlaneseq
    %v90 = vshrl.u32 %v89, 7
    %v91 = vsub.s32 0, %v90
    %v92 = vrot.slane %v87, %v91
    %v93 = vlaneseq
    %v94 = vshrl.u32 %v93, 7
    %v95 = vsub.s32 1, %v94
    %v96 = vrot.slane %v87, %v95
    %v109 = vunpack.c.l.b16 %v77
    %v110 = vunpack.c.h.b16 %v77
    %v111 = vunpack.c.l.b16 %v78
    %v112 = vunpack.c.h.b16 %v78
    %v113 = vunpack.c.l.b16 %v79
    %v114 = vunpack.c.h.b16 %v79
    %v115 = vunpack.c.l.b16 %v80
    %v116 = vunpack.c.h.b16 %v80
    %v117 = vunpack.c.l.b16 %v81
    %v118 = vunpack.c.h.b16 %v81
    %v119 = vunpack.c.l.b16 %v82
    %v120 = vunpack.c.h.b16 %v82
    %v121 = vunpack.c.l.b16 %v83
    %v122 = vunpack.c.h.b16 %v83
    %v123 = vunpack.c.l.b16 %v84
    %v124 = vunpack.c.h.b16 %v84
    %v125 = vunpack.c.l.b16 %v85
    %v126 = vunpack.c.h.b16 %v85
    %v127 = vunpack.c.l.b16 %v86
    %v128 = vunpack.c.h.b16 %v86
    %v129 = vpack.c.b16 %v111, %v109
    %v130 = vpack.c.b16 %v112, %v110
    %v131 = vpack.c.b16 %v115, %v113
    %v132 = vpack.c.b16 %v116, %v114
    %v133 = vpack.c.b16 %v119, %v117
    %v134 = vpack.c.b16 %v120, %v118
    %v135 = vpack.c.b16 %v123, %v121
    %v136 = vpack.c.b16 %v124, %v122
    %v137 = vpack.c.b16 %v127, %v125
    %v138 = vpack.c.b16 %v128, %v126
    %vm147 = vcmask 613376
    %v149 = vsel %vm147, %v76, 0
    %vm151 = vcmask 1044480
    %vm152 = vcmask 1045504
    %v153 = vsel %vm151, 4294967295, 65535
    %v154 = vsel %vm152, %v153, 0
    %v156 = vand.u32 %v137, %v154
    %v159 = vand.u32 %v138, %v154
    %161 = vmatprep.subr.bf16.mxu0 %v130
    %162 = vmatpush1.bf16.msra.mxu0 %v129
    %163 = vmatprep.subr.bf16.mxu0 %v132
    %164 = vmatpush1.bf16.msra.mxu0 %v131
    %165 = vmatprep.subr.bf16.mxu0 %v134
    %166 = vmatpush1.bf16.msra.mxu0 %v133
    %167 = vmatprep.subr.bf16.mxu0 %v136
    %168 = vmatpush1.bf16.msra.mxu0 %v135
    %169 = vmatprep.subr.bf16.mxu0 %v159
    %170 = vmatpush1.bf16.msra.mxu0 %v156
    %171 = vmatprep.subr.bf16.mxu0 0
    %172 = vmatpush1.bf16.msra.mxu0 0
    %173 = vmatprep.subr.bf16.mxu0 0
    %174 = vmatpush1.bf16.msra.mxu0 0
    %175 = vmatprep.subr.bf16.mxu0 0
    %176 = vmatpush1.bf16.msra.mxu0 0
    %177 = vmatprep.subr.bf16.mxu0 0
    %178 = vmatpush1.bf16.msra.mxu0 0
    %179 = vmatprep.subr.bf16.mxu0 0
    %180 = vmatpush1.bf16.msra.mxu0 0
    %181 = vmatprep.subr.bf16.mxu0 0
    %182 = vmatpush1.bf16.msra.mxu0 0
    %183 = vmatprep.subr.bf16.mxu0 0
    %184 = vmatpush1.bf16.msra.mxu0 0
    %185 = vmatprep.subr.bf16.mxu0 0
    %186 = vmatpush1.bf16.msra.mxu0 0
    %187 = vmatprep.subr.bf16.mxu0 0
    %188 = vmatpush1.bf16.msra.mxu0 0
    %189 = vmatprep.subr.bf16.mxu0 0
    %190 = vmatpush1.bf16.msra.mxu0 0
    %191 = vmatprep.subr.bf16.mxu0 0
    %192 = vmatpush1.bf16.msra.mxu0 0
    %193 = vmatprep.mubr.bf16.mxu0 0
    %194 = vmatmul.mubr.bf16.gmra.mrb[0].mxu0 %v149
    %v195 = vpop.f32.mrb[0].mxu0
    %v196 = vadd.f32 %v92, %v195
    %v197 = vpop.f32.mrb[0].mxu0
    %v198 = vadd.f32 %v96, %v197
    %v199 = vpop.f32.mrb[0].mxu0
    %v200 = vpop.f32.mrb[0].mxu0
    %201 = vdwg.mxu0
    %v202 = vmax.f32 %v196, 0.0
    %v203 = vmax.f32 %v198, 0.0
    %v204 = vpack.c.bf16 %v202, %v202
    %v205 = vpack.c.bf16 %v203, %v203
    %v206 = vld [vmem:[%s3] sm:$0xf]
    %v207 = vld [vmem:[%s3 + $0x4] sm:$0xf]
    %v208 = vld [vmem:[%s3 + $0x8] sm:$0xf]
    %v209 = vld [vmem:[%s3 + $0xc] sm:$0xf]
    %v210 = vld [vmem:[%s3 + $0x10] sm:$0xf]
    %v211 = vld [vmem:[%s3 + $0x14] sm:$0xf]
    %v212 = vld [vmem:[%s3 + $0x18] sm:$0xf]
    %v213 = vld [vmem:[%s3 + $0x1c] sm:$0xf]
    %v214 = vld [vmem:[%s3 + $0x20] sm:$0xf]
    %v215 = vld [vmem:[%s3 + $0x24] sm:$0xf]
    %v216 = vld [vmem:[%s3 + $0x28] sm:$0xf]
    %v217 = vld [vmem:[%s3 + $0x2c] sm:$0xf]
    %v218 = vld [vmem:[%s3 + $0x30] sm:$0xf]
    %v219 = vld [vmem:[%s3 + $0x34] sm:$0xf]
    %v220 = vld [vmem:[%s3 + $0x38] sm:$0xf]
    %v221 = vld [vmem:[%s3 + $0x3c] sm:$0xf]
    %v222 = vld [vmem:[%s3 + $0x40] sm:$0xf]
    %v223 = vld [vmem:[%s3 + $0x44] sm:$0xf]
    %v224 = vld [vmem:[%s3 + $0x48] sm:$0xf]
    %v225 = vld [vmem:[%s3 + $0x4c] sm:$0xf]
    %v226 = vld [vmem:[%s3 + $0x50] sm:$0xf]
    %v227 = vld [vmem:[%s3 + $0x54] sm:$0xf]
    %v228 = vld [vmem:[%s3 + $0x58] sm:$0xf]
    %v229 = vld [vmem:[%s3 + $0x5c] sm:$0xf]
    %v230 = vld [vmem:[%s3 + $0x60] sm:$0xf]
    %v231 = vld [vmem:[%s3 + $0x64] sm:$0xf]
    %v232 = vld [vmem:[%s3 + $0x68] sm:$0xf]
    %v233 = vld [vmem:[%s3 + $0x6c] sm:$0xf]
    %v234 = vld [vmem:[%s3 + $0x70] sm:$0xf]
    %v235 = vld [vmem:[%s3 + $0x74] sm:$0xf]
    %v236 = vld [vmem:[%s3 + $0x78] sm:$0xf]
    %v237 = vld [vmem:[%s3 + $0x7c] sm:$0xf]
    %v238 = vld [vmem:[%s4] sm:$0x1]
    %v240 = vlaneseq
    %v241 = vshrl.u32 %v240, 7
    %v242 = vsub.s32 0, %v241
    %v243 = vrot.slane %v238, %v242
    %v277 = vunpack.c.l.b16 %v206
    %v278 = vunpack.c.l.b16 %v207
    %v279 = vunpack.c.l.b16 %v208
    %v280 = vunpack.c.l.b16 %v209
    %v281 = vunpack.c.l.b16 %v210
    %v282 = vunpack.c.l.b16 %v211
    %v283 = vunpack.c.l.b16 %v212
    %v284 = vunpack.c.l.b16 %v213
    %v285 = vunpack.c.l.b16 %v214
    %v286 = vunpack.c.l.b16 %v215
    %v287 = vunpack.c.l.b16 %v216
    %v288 = vunpack.c.l.b16 %v217
    %v289 = vunpack.c.l.b16 %v218
    %v290 = vunpack.c.l.b16 %v219
    %v291 = vunpack.c.l.b16 %v220
    %v292 = vunpack.c.l.b16 %v221
    %v293 = vunpack.c.l.b16 %v222
    %v294 = vunpack.c.l.b16 %v223
    %v295 = vunpack.c.l.b16 %v224
    %v296 = vunpack.c.l.b16 %v225
    %v297 = vunpack.c.l.b16 %v226
    %v298 = vunpack.c.l.b16 %v227
    %v299 = vunpack.c.l.b16 %v228
    %v300 = vunpack.c.l.b16 %v229
    %v301 = vunpack.c.l.b16 %v230
    %v302 = vunpack.c.l.b16 %v231
    %v303 = vunpack.c.l.b16 %v232
    %v304 = vunpack.c.l.b16 %v233
    %v305 = vunpack.c.l.b16 %v234
    %v306 = vunpack.c.l.b16 %v235
    %v307 = vunpack.c.l.b16 %v236
    %v308 = vunpack.c.l.b16 %v237
    %v309 = vpack.c.b16 %v278, %v277
    %v310 = vpack.c.b16 %v280, %v279
    %v311 = vpack.c.b16 %v282, %v281
    %v312 = vpack.c.b16 %v284, %v283
    %v313 = vpack.c.b16 %v286, %v285
    %v314 = vpack.c.b16 %v288, %v287
    %v315 = vpack.c.b16 %v290, %v289
    %v316 = vpack.c.b16 %v292, %v291
    %v317 = vpack.c.b16 %v294, %v293
    %v318 = vpack.c.b16 %v296, %v295
    %v319 = vpack.c.b16 %v298, %v297
    %v320 = vpack.c.b16 %v300, %v299
    %v321 = vpack.c.b16 %v302, %v301
    %v322 = vpack.c.b16 %v304, %v303
    %v323 = vpack.c.b16 %v306, %v305
    %v324 = vpack.c.b16 %v308, %v307
    %341 = vmatprep.subr.bf16.mxu0 0
    %342 = vmatpush1.bf16.msra.mxu0 %v309
    %343 = vmatprep.subr.bf16.mxu0 0
    %344 = vmatpush1.bf16.msra.mxu0 %v310
    %345 = vmatprep.subr.bf16.mxu0 0
    %346 = vmatpush1.bf16.msra.mxu0 %v311
    %347 = vmatprep.subr.bf16.mxu0 0
    %348 = vmatpush1.bf16.msra.mxu0 %v312
    %349 = vmatprep.subr.bf16.mxu0 0
    %350 = vmatpush1.bf16.msra.mxu0 %v313
    %351 = vmatprep.subr.bf16.mxu0 0
    %352 = vmatpush1.bf16.msra.mxu0 %v314
    %353 = vmatprep.subr.bf16.mxu0 0
    %354 = vmatpush1.bf16.msra.mxu0 %v315
    %355 = vmatprep.subr.bf16.mxu0 0
    %356 = vmatpush1.bf16.msra.mxu0 %v316
    %357 = vmatprep.subr.bf16.mxu0 0
    %358 = vmatpush1.bf16.msra.mxu0 %v317
    %359 = vmatprep.subr.bf16.mxu0 0
    %360 = vmatpush1.bf16.msra.mxu0 %v318
    %361 = vmatprep.subr.bf16.mxu0 0
    %362 = vmatpush1.bf16.msra.mxu0 %v319
    %363 = vmatprep.subr.bf16.mxu0 0
    %364 = vmatpush1.bf16.msra.mxu0 %v320
    %365 = vmatprep.subr.bf16.mxu0 0
    %366 = vmatpush1.bf16.msra.mxu0 %v321
    %367 = vmatprep.subr.bf16.mxu0 0
    %368 = vmatpush1.bf16.msra.mxu0 %v322
    %369 = vmatprep.subr.bf16.mxu0 0
    %370 = vmatpush1.bf16.msra.mxu0 %v323
    %371 = vmatprep.subr.bf16.mxu0 0
    %372 = vmatpush1.bf16.msra.mxu0 %v324
    %373 = vmatprep.mubr.bf16.mxu0 %v205
    %374 = vmatmul.mubr.bf16.gmra.mrb[0].mxu0 %v204
    %v375 = vpop.f32.mrb[0].mxu0
    %v376 = vadd.f32 %v243, %v375
    %v377 = vpop.f32.mrb[0].mxu0
    %v378 = vpop.f32.mrb[0].mxu0
    %v379 = vpop.f32.mrb[0].mxu0
    %380 = vdwg.mxu0
    %v381 = vmax.f32 %v376, 0.0
    %v382 = vpack.c.bf16 %v381, %v381
    %v383 = vld [vmem:[%s5] sm:$0xf]
    %v384 = vld [vmem:[%s5 + $0x4] sm:$0xf]
    %v385 = vld [vmem:[%s5 + $0x8] sm:$0xf]
    %v386 = vld [vmem:[%s5 + $0xc] sm:$0xf]
    %v387 = vld [vmem:[%s5 + $0x10] sm:$0xf]
    %v388 = vld [vmem:[%s5 + $0x14] sm:$0xf]
    %v389 = vld [vmem:[%s5 + $0x18] sm:$0xf]
    %v390 = vld [vmem:[%s5 + $0x1c] sm:$0xf]
    %v391 = vld [vmem:[%s5 + $0x20] sm:$0xf]
    %v392 = vld [vmem:[%s5 + $0x24] sm:$0xf]
    %v393 = vld [vmem:[%s5 + $0x28] sm:$0xf]
    %v394 = vld [vmem:[%s5 + $0x2c] sm:$0xf]
    %v395 = vld [vmem:[%s5 + $0x30] sm:$0xf]
    %v396 = vld [vmem:[%s5 + $0x34] sm:$0xf]
    %v397 = vld [vmem:[%s5 + $0x38] sm:$0xf]
    %v398 = vld [vmem:[%s5 + $0x3c] sm:$0xf]
    %v399 = vld [vmem:[#allocation5] sm:$0x1]
    %v401 = vlaneseq
    %v402 = vshrl.u32 %v401, 7
    %v403 = vsub.s32 0, %v402
    %v404 = vrot.slane %v399, %v403
    %v422 = vunpack.c.l.b16 %v383
    %v423 = vunpack.c.l.b16 %v384
    %v424 = vunpack.c.l.b16 %v385
    %v425 = vunpack.c.l.b16 %v386
    %v426 = vunpack.c.l.b16 %v387
    %v427 = vunpack.c.l.b16 %v388
    %v428 = vunpack.c.l.b16 %v389
    %v429 = vunpack.c.l.b16 %v390
    %v430 = vunpack.c.l.b16 %v391
    %v431 = vunpack.c.l.b16 %v392
    %v432 = vunpack.c.l.b16 %v393
    %v433 = vunpack.c.l.b16 %v394
    %v434 = vunpack.c.l.b16 %v395
    %v435 = vunpack.c.l.b16 %v396
    %v436 = vunpack.c.l.b16 %v397
    %v437 = vunpack.c.l.b16 %v398
    %v438 = vpack.c.b16 %v423, %v422
    %v439 = vpack.c.b16 %v425, %v424
    %v440 = vpack.c.b16 %v427, %v426
    %v441 = vpack.c.b16 %v429, %v428
    %v442 = vpack.c.b16 %v431, %v430
    %v443 = vpack.c.b16 %v433, %v432
    %v444 = vpack.c.b16 %v435, %v434
    %v445 = vpack.c.b16 %v437, %v436
    %454 = vmatprep.subr.bf16.mxu0 0
    %455 = vmatpush1.bf16.msra.mxu0 %v438
    %456 = vmatprep.subr.bf16.mxu0 0
    %457 = vmatpush1.bf16.msra.mxu0 %v439
    %458 = vmatprep.subr.bf16.mxu0 0
    %459 = vmatpush1.bf16.msra.mxu0 %v440
    %460 = vmatprep.subr.bf16.mxu0 0
    %461 = vmatpush1.bf16.msra.mxu0 %v441
    %462 = vmatprep.subr.bf16.mxu0 0
    %463 = vmatpush1.bf16.msra.mxu0 %v442
    %464 = vmatprep.subr.bf16.mxu0 0
    %465 = vmatpush1.bf16.msra.mxu0 %v443
    %466 = vmatprep.subr.bf16.mxu0 0
    %467 = vmatpush1.bf16.msra.mxu0 %v444
    %468 = vmatprep.subr.bf16.mxu0 0
    %469 = vmatpush1.bf16.msra.mxu0 %v445
    %470 = vmatprep.subr.bf16.mxu0 0
    %471 = vmatpush1.bf16.msra.mxu0 0
    %472 = vmatprep.subr.bf16.mxu0 0
    %473 = vmatpush1.bf16.msra.mxu0 0
    %474 = vmatprep.subr.bf16.mxu0 0
    %475 = vmatpush1.bf16.msra.mxu0 0
    %476 = vmatprep.subr.bf16.mxu0 0
    %477 = vmatpush1.bf16.msra.mxu0 0
    %478 = vmatprep.subr.bf16.mxu0 0
    %479 = vmatpush1.bf16.msra.mxu0 0
    %480 = vmatprep.subr.bf16.mxu0 0
    %481 = vmatpush1.bf16.msra.mxu0 0
    %482 = vmatprep.subr.bf16.mxu0 0
    %483 = vmatpush1.bf16.msra.mxu0 0
    %484 = vmatprep.subr.bf16.mxu0 0
    %485 = vmatpush1.bf16.msra.mxu0 0
    %486 = vmatprep.mubr.bf16.mxu0 0
    %487 = vmatmul.mubr.bf16.gmra.mrb[0].mxu0 %v382
    %v488 = vpop.f32.mrb[0].mxu0
    %v489 = vadd.f32 %v404, %v488
    %v490 = vpop.f32.mrb[0].mxu0
    %v491 = vpop.f32.mrb[0].mxu0
    %v492 = vpop.f32.mrb[0].mxu0
    %493 = vdwg.mxu0
    %v494 = vmax.f32 %v489, 0.0
    %v495 = vpack.c.bf16 %v494, %v494
    %v496 = vld [vmem:[%s7] sm:$0xf]
    %v497 = vld [vmem:[%s7 + $0x4] sm:$0xf]
    %v498 = vld [vmem:[%s7 + $0x8] sm:$0xf]
    %v499 = vld [vmem:[%s7 + $0xc] sm:$0xf]
    %v500 = vld [vmem:[%s7 + $0x10] sm:$0xf]
    %v501 = vld [vmem:[%s7 + $0x14] sm:$0xf]
    %v502 = vld [vmem:[%s7 + $0x18] sm:$0xf]
    %v503 = vld [vmem:[%s7 + $0x1c] sm:$0xf]
    %v504 = vld [vmem:[#allocation7] sm:$0x1]
    %v506 = vlaneseq
    %v507 = vshrl.u32 %v506, 7
    %v508 = vsub.s32 0, %v507
    %v509 = vrot.slane %v504, %v508
    %v519 = vunpack.c.l.b16 %v496
    %v520 = vunpack.c.l.b16 %v497
    %v521 = vunpack.c.l.b16 %v498
    %v522 = vunpack.c.l.b16 %v499
    %v523 = vunpack.c.l.b16 %v500
    %v524 = vunpack.c.l.b16 %v501
    %v525 = vunpack.c.l.b16 %v502
    %v526 = vunpack.c.l.b16 %v503
    %v527 = vpack.c.b16 %v520, %v519
    %v528 = vpack.c.b16 %v522, %v521
    %v529 = vpack.c.b16 %v524, %v523
    %v530 = vpack.c.b16 %v526, %v525
    %vm535 = vcmask 523264
    %v537 = vsel %vm535, %v495, 0
    %539 = vmatprep.subr.bf16.mxu0 0
    %540 = vmatpush1.bf16.msra.mxu0 %v527
    %541 = vmatprep.subr.bf16.mxu0 0
    %542 = vmatpush1.bf16.msra.mxu0 %v528
    %543 = vmatprep.subr.bf16.mxu0 0
    %544 = vmatpush1.bf16.msra.mxu0 %v529
    %545 = vmatprep.subr.bf16.mxu0 0
    %546 = vmatpush1.bf16.msra.mxu0 %v530
    %547 = vmatprep.subr.bf16.mxu0 0
    %548 = vmatpush1.bf16.msra.mxu0 0
    %549 = vmatprep.subr.bf16.mxu0 0
    %550 = vmatpush1.bf16.msra.mxu0 0
    %551 = vmatprep.subr.bf16.mxu0 0
    %552 = vmatpush1.bf16.msra.mxu0 0
    %553 = vmatprep.subr.bf16.mxu0 0
    %554 = vmatpush1.bf16.msra.mxu0 0
    %555 = vmatprep.subr.bf16.mxu0 0
    %556 = vmatpush1.bf16.msra.mxu0 0
    %557 = vmatprep.subr.bf16.mxu0 0
    %558 = vmatpush1.bf16.msra.mxu0 0
    %559 = vmatprep.subr.bf16.mxu0 0
    %560 = vmatpush1.bf16.msra.mxu0 0
    %561 = vmatprep.subr.bf16.mxu0 0
    %562 = vmatpush1.bf16.msra.mxu0 0
    %563 = vmatprep.subr.bf16.mxu0 0
    %564 = vmatpush1.bf16.msra.mxu0 0
    %565 = vmatprep.subr.bf16.mxu0 0
    %566 = vmatpush1.bf16.msra.mxu0 0
    %567 = vmatprep.subr.bf16.mxu0 0
    %568 = vmatpush1.bf16.msra.mxu0 0
    %569 = vmatprep.subr.bf16.mxu0 0
    %570 = vmatpush1.bf16.msra.mxu0 0
    %571 = vmatprep.mubr.bf16.mxu0 0
    %572 = vmatmul.mubr.bf16.gmra.mrb[0].mxu0 %v537
    %v573 = vpop.f32.mrb[0].mxu0
    %v574 = vadd.f32 %v509, %v573
    %v575 = vpop.f32.mrb[0].mxu0
    %v576 = vpop.f32.mrb[0].mxu0
    %v577 = vpop.f32.mrb[0].mxu0
    %578 = vdwg.mxu0
    %v579 = vmax.f32 %v574, 0.0
    %v580 = vpack.c.bf16 %v579, %v579
    %v581 = vld [vmem:[%s9] sm:$0xf]
    %v582 = vld [vmem:[%s9 + $0x4] sm:$0xf]
    %v583 = vld [vmem:[%s9 + $0x8] sm:$0xf]
    %v584 = vld [vmem:[%s9 + $0xc] sm:$0xf]
    %v585 = vld [vmem:[%s10] sm:$0x1]
    %v587 = vlaneseq
    %v588 = vshrl.u32 %v587, 7
    %v589 = vsub.s32 0, %v588
    %v590 = vrot.slane %v585, %v589
    %v596 = vunpack.c.l.b16 %v581
    %v597 = vunpack.c.l.b16 %v582
    %v598 = vunpack.c.l.b16 %v583
    %v599 = vunpack.c.l.b16 %v584
    %v600 = vpack.c.b16 %v597, %v596
    %v601 = vpack.c.b16 %v599, %v598
    %vm604 = vcmask 261120
    %v606 = vsel %vm604, %v580, 0
    %608 = vmatprep.subr.bf16.mxu0 0
    %609 = vmatpush1.bf16.msra.mxu0 %v600
    %610 = vmatprep.subr.bf16.mxu0 0
    %611 = vmatpush1.bf16.msra.mxu0 %v601
    %612 = vmatprep.subr.bf16.mxu0 0
    %613 = vmatpush1.bf16.msra.mxu0 0
    %614 = vmatprep.subr.bf16.mxu0 0
    %615 = vmatpush1.bf16.msra.mxu0 0
    %616 = vmatprep.subr.bf16.mxu0 0
    %617 = vmatpush1.bf16.msra.mxu0 0
    %618 = vmatprep.subr.bf16.mxu0 0
    %619 = vmatpush1.bf16.msra.mxu0 0
    %620 = vmatprep.subr.bf16.mxu0 0
    %621 = vmatpush1.bf16.msra.mxu0 0
    %622 = vmatprep.subr.bf16.mxu0 0
    %623 = vmatpush1.bf16.msra.mxu0 0
    %624 = vmatprep.subr.bf16.mxu0 0
    %625 = vmatpush1.bf16.msra.mxu0 0
    %626 = vmatprep.subr.bf16.mxu0 0
    %627 = vmatpush1.bf16.msra.mxu0 0
    %628 = vmatprep.subr.bf16.mxu0 0
    %629 = vmatpush1.bf16.msra.mxu0 0
    %630 = vmatprep.subr.bf16.mxu0 0
    %631 = vmatpush1.bf16.msra.mxu0 0
    %632 = vmatprep.subr.bf16.mxu0 0
    %633 = vmatpush1.bf16.msra.mxu0 0
    %634 = vmatprep.subr.bf16.mxu0 0
    %635 = vmatpush1.bf16.msra.mxu0 0
    %636 = vmatprep.subr.bf16.mxu0 0
    %637 = vmatpush1.bf16.msra.mxu0 0
    %638 = vmatprep.subr.bf16.mxu0 0
    %639 = vmatpush1.bf16.msra.mxu0 0
    %640 = vmatprep.mubr.bf16.mxu0 0
    %641 = vmatmul.mubr.bf16.gmra.mrb[0].mxu0 %v606
    %v642 = vpop.f32.mrb[0].mxu0
    %v643 = vadd.f32 %v590, %v642
    %v644 = vpop.f32.mrb[0].mxu0
    %v645 = vpop.f32.mrb[0].mxu0
    %v646 = vpop.f32.mrb[0].mxu0
    %647 = vdwg.mxu0
    %vm648 = vcmask 64512
    %649 = vst.msk [vmem:[#allocation8] sm:$0xff] %vm648, %v643
    // Predicated region
    $region58: #{mymlp_forward.1} parent=1 // pred_check
      _
    $region59: #{mymlp_forward.1} parent=1 // pred_check_branch
      %651 = sbr.rel (0) target = $region61
    $region60: #{mymlp_forward.1} parent=1 // pred_region
      %s653 = ssub.s32 128, 128
      %654 = vsyncadd [#allocation4], %s653
      %s656 = sshll.u32 [#allocation8], 4
      %s657 = int_to_ptr.vmem [resolvable:$true] %s656
      %659 = dma.vmem_to_hbm [thread:$0]  %s657, 128, %s11, [#allocation4]
    $region61: #{mymlp_forward.1} parent=1 // pred_fallthru
      _
    // Predicated region
    $region62: #{mymlp_forward.1} parent=1 // pred_check
      _
    $region63: #{mymlp_forward.1} parent=1 // pred_check_branch
      %661 = sbr.rel (0) target = $region65
    $region64: #{mymlp_forward.1} parent=1 // pred_region
      %662 = dma.done [#allocation4], 128
    $region65: #{mymlp_forward.1} parent=1 // pred_fallthru
      _
    %663 = vsyncpa [#allocation3], 1
    %664 = vsyncpa [#allocation6], 1
    %665 = vsyncpa [#allocation4], 1

</llo_original>
